<compile_context>
chip_gen: v6e
topology: v6e:2x2x1
jax: 0.10.0
libtpu: 0.0.40
codegen_flags: <defaults>
</compile_context>

<pallas_src>
import functools
import math

import jax
import jax.numpy as jnp
from jax.experimental import pallas as pl
from jax.experimental.pallas import tpu as pltpu

EPS = 1e-5
VMEM_LIMIT = 48 * 1024 * 1024              # <= v7x's 64 MiB physical per TC; v5e/v6e have 128 MiB
SUPPORT_RESIDENT_BYTES = 8 * 1024 * 1024   # keep support fully VMEM-resident below this size


def _round_up(x, m):
    return ((x + m - 1) // m) * m


def pick_adj_tiles(n):
    """Rectangular adj tiles: short row tile TM, wide reduction tile TK.

    N is padded only as far as divisibility requires (128-aligned at minimum)."""
    n128 = _round_up(n, 128)
    best_tk, best_pad = 128, n128
    for tk in (2048, 1024, 512, 256):
        tk = min(tk, n128)
        n_pad = _round_up(n, tk)
        if (n_pad, -tk) < (best_pad, -best_tk):   # minimize padding, then maximize TK
            best_tk, best_pad = tk, n_pad
    # keep enough row tiles for megacore sharding (shrink TM before TK)
    tm = 256 if (best_pad % 256 == 0 and best_pad >= 512) else 128
    return tm, best_tk, best_pad


# ---------------------------------------------------------------------------
# Pallas kernels
# ---------------------------------------------------------------------------
def support_kernel(x_ref, ham_ref, sup_ref):
    # support tile = X_tile @ hamilton   (bf16 operands, f32 MXU accumulate, bf16 output)
    sup_ref[...] = jnp.dot(
        x_ref[...], ham_ref[...], preferred_element_type=jnp.float32
    ).astype(sup_ref.dtype)


def adj_matmul_kernel(adj_ref, sup_ref, agg_ref, sum_ref, sumsq_ref, acc_ref,
                      *, tk, support_resident):
    # agg_tile = sum_k adj[i, k] @ support[k]
    # adj may arrive as raw f32 (single-layer: no pre-cast pass) -> per-tile VPU cast to bf16,
    # hidden under the DMA / MXU; an already-bf16 adj (multi-layer) makes the cast a no-op.
    k = pl.program_id(1)
    nk = pl.num_programs(1)

    @pl.when(k == 0)
    def _():
        acc_ref[...] = jnp.zeros_like(acc_ref)

    a = adj_ref[...].astype(jnp.bfloat16)
    if support_resident:
        s = sup_ref[pl.ds(pl.multiple_of(k * tk, 128), tk), :]
    else:
        s = sup_ref[...]
    acc_ref[...] += jnp.dot(a, s, preferred_element_type=jnp.float32)

    @pl.when(k == nk - 1)
    def _():
        acc = acc_ref[...]
        agg_ref[...] = acc.astype(agg_ref.dtype)     # bf16 writeback (stats come from the f32 acc)
        # per-row-tile partials for the GLOBAL BatchNorm statistics (two separate outputs)
        sum_ref[...] = jnp.sum(acc, axis=0, keepdims=True).reshape(1, 1, -1)
        sumsq_ref[...] = jnp.sum(acc * acc, axis=0, keepdims=True).reshape(1, 1, -1)


def bn_tanh_kernel(agg_ref, mean_ref, istd_ref, x_ref):
    # finalize pass: BatchNorm (global stats, gamma=1, beta=0) + tanh; bf16 output only
    x = (agg_ref[...].astype(jnp.float32) - mean_ref[...]) * istd_ref[...]
    x_ref[...] = jnp.tanh(x).astype(x_ref.dtype)


def hr_bn_kernel(h_ref, r_ref, out_ref, *, b_true):
    # BN1(h * r) over the TRUE batch rows (padded rows are zero and excluded via the divisor)
    hr = h_ref[...].astype(jnp.float32) * r_ref[...].astype(jnp.float32)
    inv_b = 1.0 / b_true
    mean = jnp.sum(hr, axis=0, keepdims=True) * inv_b
    var = jnp.maximum(jnp.sum(hr * hr, axis=0, keepdims=True) * inv_b - mean * mean, 0.0)
    # TODO(synk): hidden_dropout2 -> identity (eval-mode)
    out_ref[...] = ((hr - mean) * jax.lax.rsqrt(var + EPS)).astype(out_ref.dtype)


def score_kernel(hr_ref, x_ref, out_ref):
    # hrt = hr @ X_tile^T without materializing the transpose (contract on the feature dim)
    hrt = jax.lax.dot_general(
        hr_ref[...], x_ref[...],
        dimension_numbers=(((1,), (1,)), ((), ())),
        preferred_element_type=jnp.float32,
    )
    out_ref[...] = jax.nn.sigmoid(hrt)


# ---------------------------------------------------------------------------
# Pallas wrappers
# ---------------------------------------------------------------------------
def ognn_layer(x_bf16, hamilton_bf16, adj_p, n_true, tm, tk, n_pad):
    """One OGNN layer: tanh(BN(adj @ (X @ hamilton))).  Returns X as (n_pad, out_dim) bf16."""
    in_dim = x_bf16.shape[1]
    out_dim = hamilton_bf16.shape[1]           # already padded to a multiple of 128
    n_row_tiles = n_pad // tm
    n_k_tiles = n_pad // tk

    # --- support = X @ hamilton (bf16 in/out, tiled by tk rows) -----------------------------
    support = pl.pallas_call(
        support_kernel,
        grid=(n_k_tiles,),
        in_specs=[
            pl.BlockSpec((tk, in_dim), lambda i: (i, 0)),
            pl.BlockSpec((in_dim, out_dim), lambda i: (0, 0)),
        ],
        out_specs=pl.BlockSpec((tk, out_dim), lambda i: (i, 0)),
        out_shape=jax.ShapeDtypeStruct((n_pad, out_dim), jnp.bfloat16),
        compiler_params=pltpu.CompilerParams(
            dimension_semantics=("parallel",), vmem_limit_bytes=VMEM_LIMIT),
    )(x_bf16, hamilton_bf16)

    # --- agg = adj @ support, streaming adj in (tm, tk) blocks, f32 accumulate --------------
    support_resident = (n_pad * out_dim * 2) <= SUPPORT_RESIDENT_BYTES
    if support_resident:
        sup_spec = pl.BlockSpec((n_pad, out_dim), lambda i, k: (0, 0))  # DMA'd once, stays resident
    else:
        sup_spec = pl.BlockSpec((tk, out_dim), lambda i, k: (k, 0))     # re-streamed per row tile

    adj_itemsize = int(jnp.dtype(adj_p.dtype).itemsize)
    flops = 2 * n_pad * n_pad * out_dim
    bytes_accessed = (
        adj_itemsize * n_pad * n_pad                                    # adj stream
        + 2 * n_pad * out_dim * (1 if support_resident else n_row_tiles)
        + 2 * n_pad * out_dim                                           # agg writeback (bf16)
        + 2 * 4 * n_row_tiles * out_dim                                 # BN partials
    )
    agg, psum, psumsq = pl.pallas_call(
        functools.partial(adj_matmul_kernel, tk=tk, support_resident=support_resident),
        grid=(n_row_tiles, n_k_tiles),        # row tiles parallel; reduction axis last
        in_specs=[
            # NOTE: if profiling shows DMA gaps on the adj stream, add pipeline_mode=pl.Buffered(3).
            pl.BlockSpec((tm, tk), lambda i, k: (i, k)),
            sup_spec,
        ],
        out_specs=(
            pl.BlockSpec((tm, out_dim), lambda i, k: (i, 0)),
            pl.BlockSpec((1, 1, out_dim), lambda i, k: (i, 0, 0)),
            pl.BlockSpec((1, 1, out_dim), lambda i, k: (i, 0, 0)),
        ),
        out_shape=(
            jax.ShapeDtypeStruct((n_pad, out_dim), jnp.bfloat16),
            jax.ShapeDtypeStruct((n_row_tiles, 1, out_dim), jnp.float32),
            jax.ShapeDtypeStruct((n_row_tiles, 1, out_dim), jnp.float32),
        ),
        scratch_shapes=[pltpu.VMEM((tm, out_dim), jnp.float32)],
        compiler_params=pltpu.CompilerParams(
            dimension_semantics=("parallel", "arbitrary"),
            vmem_limit_bytes=VMEM_LIMIT),
        cost_estimate=pl.CostEstimate(
            flops=flops, transcendentals=0, bytes_accessed=bytes_accessed),
    )(adj_p, support)

    # --- global BatchNorm statistics (true-N divisor; padded rows/cols contribute zeros) ----
    n_f = float(n_true)
    colsum = jnp.sum(psum[:, 0, :], axis=0)
    colsumsq = jnp.sum(psumsq[:, 0, :], axis=0)
    mean = (colsum / n_f)[None, :]
    # E[x^2]-E[x]^2 in f32; fine for row-normalized aggregates (watch cancellation for huge means).
    var = jnp.maximum(colsumsq / n_f - (colsum / n_f) ** 2, 0.0)[None, :]
    inv_std = jax.lax.rsqrt(var + EPS)

    # --- finalize: normalize + tanh, bf16 output (X stays bf16 end-to-end) ------------------
    x_out = pl.pallas_call(
        bn_tanh_kernel,
        grid=(n_k_tiles,),
        in_specs=[
            pl.BlockSpec((tk, out_dim), lambda i: (i, 0)),
            pl.BlockSpec((1, out_dim), lambda i: (0, 0)),
            pl.BlockSpec((1, out_dim), lambda i: (0, 0)),
        ],
        out_specs=pl.BlockSpec((tk, out_dim), lambda i: (i, 0)),
        out_shape=jax.ShapeDtypeStruct((n_pad, out_dim), jnp.bfloat16),
        compiler_params=pltpu.CompilerParams(
            dimension_semantics=("parallel",), vmem_limit_bytes=VMEM_LIMIT),
    )(agg, mean, inv_std)
    return x_out


def hr_batchnorm(h, r, b_true):
    b_pad, d = h.shape
    return pl.pallas_call(
        functools.partial(hr_bn_kernel, b_true=float(b_true)),
        out_shape=jax.ShapeDtypeStruct((b_pad, d), jnp.bfloat16),
        in_specs=[pl.BlockSpec(memory_space=pltpu.MemorySpace.VMEM)] * 2,
        out_specs=pl.BlockSpec(memory_space=pltpu.MemorySpace.VMEM),
    )(h, r)


def score(hr_bf16, x_bf16, tn):
    b_pad, d = hr_bf16.shape
    n_pad = x_bf16.shape[0]
    n_tiles = n_pad // tn
    return pl.pallas_call(
        score_kernel,
        grid=(n_tiles,),
        in_specs=[
            pl.BlockSpec((b_pad, d), lambda j: (0, 0)),
            pl.BlockSpec((tn, d), lambda j: (j, 0)),
        ],
        out_specs=pl.BlockSpec((b_pad, tn), lambda j: (0, j)),   # lane-dense (B_pad, TN) tiles
        out_shape=jax.ShapeDtypeStruct((b_pad, n_pad), jnp.float32),
        compiler_params=pltpu.CompilerParams(
            dimension_semantics=("parallel",), vmem_limit_bytes=VMEM_LIMIT),
        cost_estimate=pl.CostEstimate(
            flops=2 * b_pad * d * n_pad,
            transcendentals=b_pad * n_pad,
            bytes_accessed=2 * n_pad * d + 2 * b_pad * d + 4 * b_pad * n_pad),
    )(hr_bf16, x_bf16)


# ---------------------------------------------------------------------------
# JAX glue: octonion "hamilton" construction (pure layout / concat, no hot compute)
# ---------------------------------------------------------------------------
def make_octonion_mul(kernel):
    # kernel: (in_dim // 8, out_dim) -> hamilton: (in_dim, out_dim)
    a0, a1, a2, a3, a4, a5, a6, a7 = jnp.split(kernel, 8, axis=1)
    rows = [
        [a0, a1, a2, a3, a4, a5, a6, a7],
        [a1, -a0, a3, -a2, a5, -a4, -a7, a6],
        [a2, -a3, -a0, a1, a6, a7, -a4, -a5],
        [a3, a2, -a1, -a0, a7, -a6, a5, -a4],
        [a4, -a5, -a6, -a7, -a0, a1, a2, a3],
        [a5, a4, -a7, a6, -a1, -a0, -a3, a2],
        [a6, a7, a4, -a5, -a2, a3, -a0, -a1],
        [a7, -a6, a5, a4, -a3, -a2, a1, -a0],
    ]
    return jnp.concatenate([jnp.concatenate(r, axis=0) for r in rows], axis=1)


# ---------------------------------------------------------------------------
# SimOGNN forward (OGNN encoder)
# ---------------------------------------------------------------------------
def sim_ognn_forward(params, e1_idx, r_idx, lst_ents, adj):
    n = adj.shape[0]
    tm, tk, n_pad = pick_adj_tiles(n)
    num_layers = len(params["gnn_weights"])
    hid_dim = params["gnn_weights"][0].shape[1]
    hid_pad = _round_up(hid_dim, 128)          # lane-dense kernel path; sliced back at the end

    # adj: pad only if N is not already aligned (one f32 copy).  NO extra bf16 cast pass for a
    # single layer -- the kernel casts each (TM, TK) tile on the fly.  With >= 2 layers the bf16
    # pre-cast amortizes (halves the per-layer stream), so do it once up front.
    adj_p = adj if n_pad == n else jnp.pad(adj, ((0, n_pad - n), (0, n_pad - n)))
    if num_layers >= 2:
        adj_p = adj_p.astype(jnp.bfloat16)

    # embedding lookup (gather) stays in plain JAX; pad rows / feature lanes, keep bf16 end-to-end
    X = jnp.take(params["entity_emb"], lst_ents, axis=0)            # (N, emb_dim) f32
    emb_dim = X.shape[1]
    emb_pad = _round_up(emb_dim, 128)
    X = jnp.pad(X, ((0, n_pad - n), (0, emb_pad - emb_dim))).astype(jnp.bfloat16)

    for w in params["gnn_weights"]:
        hamilton = make_octonion_mul(w)                              # (in_dim, hid_dim) f32
        ham = jnp.zeros((X.shape[1], hid_pad), jnp.bfloat16)
        ham = ham.at[: hamilton.shape[0], :hid_dim].set(hamilton.astype(jnp.bfloat16))
        X = ognn_layer(X, ham, adj_p, n_true=n, tm=tm, tk=tk, n_pad=n_pad)  # (N_pad, hid_pad) bf16

    b = e1_idx.shape[0]
    b_pad = _round_up(b, 16)                                         # sublane-dense batch rows
    h = jnp.pad(jnp.take(X, e1_idx, axis=0), ((0, b_pad - b), (0, 0)))          # (B_pad, hid_pad)
    r = jnp.take(params["relation_emb"], r_idx, axis=0)                          # (B, hid_dim) f32
    r = jnp.pad(r, ((0, b_pad - b), (0, hid_pad - hid_dim))).astype(jnp.bfloat16)
    hr = hr_batchnorm(h, r, b_true=b)                                # (B_pad, hid_pad) bf16
    pred = score(hr, X, tn=tk)                                       # (B_pad, N_pad) f32
    return pred[:b, :n]                                              # drop padded rows / columns


# ---------------------------------------------------------------------------
# Deterministic parameter init (mirrors module __init__ shapes)
# ---------------------------------------------------------------------------
def init_params(key, n_entities, n_relations, emb_dim, hid_dim, num_layers=1):
    k_ent, k_rel, k_gnn = jax.random.split(key, 3)
    # xavier_normal_
    ent_std = math.sqrt(2.0 / (n_entities + emb_dim))
    rel_std = math.sqrt(2.0 / (n_relations + hid_dim))
    entity_emb = ent_std * jax.random.normal(k_ent, (n_entities, emb_dim), jnp.float32)
    relation_emb = rel_std * jax.random.normal(k_rel, (n_relations, hid_dim), jnp.float32)
    gnn_weights = []
    in_dim = emb_dim
    keys = jax.random.split(k_gnn, num_layers)
    for layer in range(num_layers):
        stdv = math.sqrt(6.0 / (in_dim // 8 + hid_dim))
        w = jax.random.uniform(keys[layer], (in_dim // 8, hid_dim),
                               jnp.float32, minval=-stdv, maxval=stdv)
        gnn_weights.append(w)
        in_dim = hid_dim
    return {"entity_emb": entity_emb, "relation_emb": relation_emb,
            "gnn_weights": gnn_weights}


if __name__ == "__main__":
    n_entities, n_relations = 16, 4
    emb_dim, hid_dim = 32, 32   # both divisible by 8 (octonion split)
    batch = 4
    num_layers = 1

    key = jax.random.PRNGKey(0)
    k_params, k_adj, k_e1, k_r = jax.random.split(key, 4)

    params = init_params(k_params, n_entities, n_relations, emb_dim, hid_dim, num_layers)

    # dense, row-normalized adjacency (stand-in for the sparse `adj` buffer)
    a = jax.random.uniform(k_adj, (n_entities, n_entities), jnp.float32)
    a = a + jnp.eye(n_entities, dtype=jnp.float32)
    adj = a / jnp.sum(a, axis=1, keepdims=True)

    lst_ents = jnp.arange(n_entities, dtype=jnp.int32)
    e1_idx = jax.random.randint(k_e1, (batch,), 0, n_entities, dtype=jnp.int32)
    r_idx = jax.random.randint(k_r, (batch,), 0, n_relations, dtype=jnp.int32)

    pred = sim_ognn_forward(params, e1_idx, r_idx, lst_ents, adj)
    pred = jax.block_until_ready(pred)

    assert pred.shape == (batch, n_entities)
    assert bool(jnp.all(jnp.isfinite(pred)))
    assert bool(jnp.all((pred >= 0.0) & (pred <= 1.0)))
    print("KERNEL_OK")
</pallas_src>

<mosaic_0001>
module attributes {stable_mosaic.version = 11 : i64} {
  func.func @support_kernel(%arg0: i32, %arg1: memref<128x128xbf16, #tpu.memory_space<vmem>>, %arg2: memref<128x128xbf16, #tpu.memory_space<vmem>>, %arg3: memref<128x128xbf16, #tpu.memory_space<vmem>>) attributes {dimension_semantics = [#tpu.dimension_semantics<parallel>], iteration_bounds = array<i64: 1>, scalar_prefetch = 0 : i64, scratch_operands = 0 : i64, tpu.core_type = #tpu.core_type<tc>, window_params = [{transform_indices = @transform_0, window_bounds = array<i64: 128, 128>}, {pipeline_mode = #tpu.pipeline_mode<synchronous>, transform_indices = @transform_1, window_bounds = array<i64: 128, 128>}, {transform_indices = @transform_2, window_bounds = array<i64: 128, 128>}]} {
    %c0 = arith.constant 0 : index
    %c0_0 = arith.constant 0 : index
    %0 = vector.load %arg1[%c0, %c0_0] : memref<128x128xbf16, #tpu.memory_space<vmem>>, vector<128x128xbf16>
    %c0_1 = arith.constant 0 : index
    %c0_2 = arith.constant 0 : index
    %1 = vector.load %arg2[%c0_1, %c0_2] : memref<128x128xbf16, #tpu.memory_space<vmem>>, vector<128x128xbf16>
    %cst = arith.constant dense<0.000000e+00> : vector<128x128xf32>
    %2 = tpu.matmul %0, %1, %cst {dimension_numbers = #tpu.dot_dimension_numbers<[1], [0], [0], [1], [0, 0, 1, 1], [], []>} : vector<128x128xbf16>, vector<128x128xbf16>, vector<128x128xf32> -> vector<128x128xf32>
    %3 = arith.truncf %2 : vector<128x128xf32> to vector<128x128xbf16>
    %c0_3 = arith.constant 0 : index
    %c0_4 = arith.constant 0 : index
    %4 = vector.load %arg3[%c0_3, %c0_4] : memref<128x128xbf16, #tpu.memory_space<vmem>>, vector<128x128xbf16>
    tpu.vector_store %arg3[%c0_3, %c0_4], %3 {strides = array<i32>} : memref<128x128xbf16, #tpu.memory_space<vmem>>, vector<128x128xbf16>,
    return
  }
  func.func @transform_0(%arg0: i32) -> (i32, i32) {
    %c0_i32 = arith.constant 0 : i32
    %c0_i32_0 = arith.constant 0 : i32
    return %arg0, %c0_i32 : i32, i32
  }
  func.func @transform_1(%arg0: i32) -> (i32, i32) {
    %c0_i32 = arith.constant 0 : i32
    %c0_i32_0 = arith.constant 0 : i32
    %c0_i32_1 = arith.constant 0 : i32
    return %c0_i32, %c0_i32_0 : i32, i32
  }
  func.func @transform_2(%arg0: i32) -> (i32, i32) {
    %c0_i32 = arith.constant 0 : i32
    %c0_i32_0 = arith.constant 0 : i32
    return %arg0, %c0_i32 : i32, i32
  }
}

</mosaic_0001>

<llo_original>
// kernel: tpu_custom_call.1
$region0: #{tpu_custom_call.1}
  #allocation0 [shape = 'u32[]', space=smem, size = 0x4, offset = 0x4, fixed_abs, tag = 'smem constant byte address 0x4 - core index']
  #allocation1 [shape = 'u32[144,128]{1,0:T(1,128)}', space=vmem, size = 0x12000, scoped, tag = 'internal scratch']
  %s0 = inlined_call_operand.hbm [shape: bf16[128,128], index: 0, kind: input, shape index: {}]
  %s1 = inlined_call_operand.hbm [shape: bf16[128,128], index: 1, kind: input, shape index: {}]
  %s2 = inlined_call_operand.hbm [shape: bf16[128,128], index: 2, kind: output, shape index: {}]
  %s3 = sld [smem:[#allocation0]]
  $region26: #{tpu_custom_call.1} parent=0
    _
  %s5 = ssub.s32 1, %s3
  %s6 = scalar_select 0, %s5, %s3
  $region1: #{tpu_custom_call.1} parent=0
    #allocation2 [shape = 'u8[32768]{0}', space=vmem, size = 0x8000, scoped, tag = 'input window, operand 0, single buffered']
    #allocation3 [shape = 's32[1]{0}', space=sflag, size = 0x4, scoped, tag = 'scoped memory for tpu_custom_call.1']
    #allocation4 [shape = 's32[1]{0}', space=sflag, size = 0x4, scoped, tag = 'scoped memory for tpu_custom_call.1']
    #allocation5 [shape = 'u8[32768]{0}', space=vmem, size = 0x8000, scoped, tag = 'input window, operand 1, single buffered']
    #allocation6 [shape = 's32[1]{0}', space=sflag, size = 0x4, scoped, tag = 'scoped memory for tpu_custom_call.1']
    #allocation7 [shape = 'u8[32768]{0}', space=vmem, size = 0x8000, scoped, tag = 'output window, operand 0, single buffered']
    %7 = vsyncpa [#allocation3], 0
    %8 = vsyncpa [#allocation6], 0
    %9 = vsyncpa [#allocation4], 0
    // Predicated region
    $region2: #{tpu_custom_call.1} parent=1 // pred_check
      _
    $region3: #{tpu_custom_call.1} parent=1 // pred_check_branch
      %11 = sbr.rel (0) target = $region5
    $region4: #{tpu_custom_call.1} parent=1 // pred_region
      %s13 = ssub.s32 1024, 1024
      %14 = vsyncadd [#allocation3], %s13
      %s15 = sshll.u32 [#allocation2], 4
      %s16 = int_to_ptr.vmem [resolvable:$true] %s15
      %21 = dma.hbm_to_vmem [thread:$0]  %s0, 1024, %s16, [#allocation3], 64, 64, 4
    $region5: #{tpu_custom_call.1} parent=1 // pred_fallthru
      _
    // Predicated region
    $region6: #{tpu_custom_call.1} parent=1 // pred_check
      _
    $region7: #{tpu_custom_call.1} parent=1 // pred_check_branch
      %23 = sbr.rel (0) target = $region9
    $region8: #{tpu_custom_call.1} parent=1 // pred_region
      %s25 = ssub.s32 1024, 1024
      %26 = vsyncadd [#allocation6], %s25
      %s27 = sshll.u32 [#allocation5], 4
      %s28 = int_to_ptr.vmem [resolvable:$true] %s27
      %33 = dma.hbm_to_vmem [thread:$0]  %s1, 1024, %s28, [#allocation6], 64, 64, 4
    $region9: #{tpu_custom_call.1} parent=1 // pred_fallthru
      _
    // Predicated region
    $region10: #{tpu_custom_call.1} parent=1 // pred_check
      _
    $region11: #{tpu_custom_call.1} parent=1 // pred_check_branch
      %35 = sbr.rel (0) target = $region13
    $region12: #{tpu_custom_call.1} parent=1 // pred_region
      %36 = dma.done [#allocation3], 1024
    $region13: #{tpu_custom_call.1} parent=1 // pred_fallthru
      _
    // Predicated region
    $region14: #{tpu_custom_call.1} parent=1 // pred_check
      _
    $region15: #{tpu_custom_call.1} parent=1 // pred_check_branch
      %38 = sbr.rel (0) target = $region17
    $region16: #{tpu_custom_call.1} parent=1 // pred_region
      %39 = dma.done [#allocation6], 1024
    $region17: #{tpu_custom_call.1} parent=1 // pred_fallthru
      _
    %v41 = vld [vmem:[#allocation2] sm:$0xf]
    %v42 = vld [vmem:[#allocation2 + $0x4] sm:$0xf]
    %v43 = vld [vmem:[#allocation2 + $0x8] sm:$0xf]
    %v44 = vld [vmem:[#allocation2 + $0xc] sm:$0xf]
    %v45 = vld [vmem:[#allocation2 + $0x10] sm:$0xf]
    %v46 = vld [vmem:[#allocation2 + $0x14] sm:$0xf]
    %v47 = vld [vmem:[#allocation2 + $0x18] sm:$0xf]
    %v48 = vld [vmem:[#allocation2 + $0x1c] sm:$0xf]
    %v49 = vld [vmem:[#allocation2 + $0x20] sm:$0xf]
    %v50 = vld [vmem:[#allocation2 + $0x24] sm:$0xf]
    %v51 = vld [vmem:[#allocation2 + $0x28] sm:$0xf]
    %v52 = vld [vmem:[#allocation2 + $0x2c] sm:$0xf]
    %v53 = vld [vmem:[#allocation2 + $0x30] sm:$0xf]
    %v54 = vld [vmem:[#allocation2 + $0x34] sm:$0xf]
    %v55 = vld [vmem:[#allocation2 + $0x38] sm:$0xf]
    %v56 = vld [vmem:[#allocation2 + $0x3c] sm:$0xf]
    %v57 = vld [vmem:[#allocation5] sm:$0xf]
    %v58 = vld [vmem:[#allocation5 + $0x4] sm:$0xf]
    %v59 = vld [vmem:[#allocation5 + $0x8] sm:$0xf]
    %v60 = vld [vmem:[#allocation5 + $0xc] sm:$0xf]
    %v61 = vld [vmem:[#allocation5 + $0x10] sm:$0xf]
    %v62 = vld [vmem:[#allocation5 + $0x14] sm:$0xf]
    %v63 = vld [vmem:[#allocation5 + $0x18] sm:$0xf]
    %v64 = vld [vmem:[#allocation5 + $0x1c] sm:$0xf]
    %v65 = vld [vmem:[#allocation5 + $0x20] sm:$0xf]
    %v66 = vld [vmem:[#allocation5 + $0x24] sm:$0xf]
    %v67 = vld [vmem:[#allocation5 + $0x28] sm:$0xf]
    %v68 = vld [vmem:[#allocation5 + $0x2c] sm:$0xf]
    %v69 = vld [vmem:[#allocation5 + $0x30] sm:$0xf]
    %v70 = vld [vmem:[#allocation5 + $0x34] sm:$0xf]
    %v71 = vld [vmem:[#allocation5 + $0x38] sm:$0xf]
    %v72 = vld [vmem:[#allocation5 + $0x3c] sm:$0xf]
    %v89 = vunpack.c.l.b16 %v41
    %v90 = vunpack.c.l.b16 %v42
    %v91 = vunpack.c.l.b16 %v43
    %v92 = vunpack.c.l.b16 %v44
    %v93 = vunpack.c.l.b16 %v45
    %v94 = vunpack.c.l.b16 %v46
    %v95 = vunpack.c.l.b16 %v47
    %v96 = vunpack.c.l.b16 %v48
    %v97 = vunpack.c.l.b16 %v49
    %v98 = vunpack.c.l.b16 %v50
    %v99 = vunpack.c.l.b16 %v51
    %v100 = vunpack.c.l.b16 %v52
    %v101 = vunpack.c.l.b16 %v53
    %v102 = vunpack.c.l.b16 %v54
    %v103 = vunpack.c.l.b16 %v55
    %v104 = vunpack.c.l.b16 %v56
    %v105 = vpack.c.b16 %v90, %v89
    %v106 = vpack.c.b16 %v92, %v91
    %v107 = vpack.c.b16 %v94, %v93
    %v108 = vpack.c.b16 %v96, %v95
    %v109 = vpack.c.b16 %v98, %v97
    %v110 = vpack.c.b16 %v100, %v99
    %v111 = vpack.c.b16 %v102, %v101
    %v112 = vpack.c.b16 %v104, %v103
    %v137 = vunpack.c.l.b16 %v57
    %v138 = vunpack.c.l.b16 %v58
    %v139 = vunpack.c.l.b16 %v59
    %v140 = vunpack.c.l.b16 %v60
    %v141 = vunpack.c.l.b16 %v61
    %v142 = vunpack.c.l.b16 %v62
    %v143 = vunpack.c.l.b16 %v63
    %v144 = vunpack.c.l.b16 %v64
    %v145 = vunpack.c.l.b16 %v65
    %v146 = vunpack.c.l.b16 %v66
    %v147 = vunpack.c.l.b16 %v67
    %v148 = vunpack.c.l.b16 %v68
    %v149 = vunpack.c.l.b16 %v69
    %v150 = vunpack.c.l.b16 %v70
    %v151 = vunpack.c.l.b16 %v71
    %v152 = vunpack.c.l.b16 %v72
    %v153 = vpack.c.b16 %v138, %v137
    %v154 = vpack.c.b16 %v140, %v139
    %v155 = vpack.c.b16 %v142, %v141
    %v156 = vpack.c.b16 %v144, %v143
    %v157 = vpack.c.b16 %v146, %v145
    %v158 = vpack.c.b16 %v148, %v147
    %v159 = vpack.c.b16 %v150, %v149
    %v160 = vpack.c.b16 %v152, %v151
    %169 = vmatprep.subr.bf16.mxu0 0
    %170 = vmatpush1.bf16.msra.mxu0 %v160
    %171 = vmatprep.subr.bf16.mxu0 0
    %172 = vmatpush1.bf16.msra.mxu0 %v159
    %173 = vmatprep.subr.bf16.mxu0 0
    %174 = vmatpush1.bf16.msra.mxu0 %v158
    %175 = vmatprep.subr.bf16.mxu0 0
    %176 = vmatpush1.bf16.msra.mxu0 %v157
    %177 = vmatprep.subr.bf16.mxu0 0
    %178 = vmatpush1.bf16.msra.mxu0 %v156
    %179 = vmatprep.subr.bf16.mxu0 0
    %180 = vmatpush1.bf16.msra.mxu0 %v155
    %181 = vmatprep.subr.bf16.mxu0 0
    %182 = vmatpush1.bf16.msra.mxu0 %v154
    %183 = vmatprep.subr.bf16.mxu0 0
    %184 = vmatpush1.bf16.msra.mxu0 %v153
    %185 = vmatprep.subr.bf16.mxu0 0
    %186 = vmatpush2.bf16.msra.mxu0 0
    %187 = vmatprep.subr.bf16.mxu0 0
    %188 = vmatpush2.bf16.msra.mxu0 0
    %189 = vmatprep.subr.bf16.mxu0 0
    %190 = vmatpush2.bf16.msra.mxu0 0
    %191 = vmatprep.subr.bf16.mxu0 0
    %192 = vmatpush2.bf16.msra.mxu0 0
    %193 = vmatprep.subr.bf16.mxu0 0
    %194 = vmatpush2.bf16.msra.mxu0 0
    %195 = vmatprep.subr.bf16.mxu0 0
    %196 = vmatpush2.bf16.msra.mxu0 0
    %197 = vmatprep.subr.bf16.mxu0 0
    %198 = vmatpush2.bf16.msra.mxu0 0
    %199 = vmatprep.subr.bf16.mxu0 0
    %200 = vmatpush2.bf16.msra.mxu0 0
    %201 = vmatprep.mubr.bf16.mxu0 0
    %202 = vmatmul.mubr.bf16.gmra.mxu0 %v105
    %v203 = vpop.f32.mrf.mxu0
    %v204 = vadd.f32 0.0, %v203
    %v205 = vpop.f32.mrf.mxu0
    %v206 = vpop.f32.mrf.mxu0
    %v207 = vadd.f32 0.0, %v206
    %v208 = vpop.f32.mrf.mxu0
    %209 = vmatprep.mubr.bf16.mxu0 0
    %210 = vmatmul.mubr.bf16.gmra.mxu0 %v106
    %v211 = vpop.f32.mrf.mxu0
    %v212 = vadd.f32 0.0, %v211
    %v213 = vpop.f32.mrf.mxu0
    %v214 = vpop.f32.mrf.mxu0
    %v215 = vadd.f32 0.0, %v214
    %v216 = vpop.f32.mrf.mxu0
    %217 = vmatprep.mubr.bf16.mxu0 0
    %218 = vmatmul.mubr.bf16.gmra.mxu0 %v107
    %v219 = vpop.f32.mrf.mxu0
    %v220 = vadd.f32 0.0, %v219
    %v221 = vpop.f32.mrf.mxu0
    %v222 = vpop.f32.mrf.mxu0
    %v223 = vadd.f32 0.0, %v222
    %v224 = vpop.f32.mrf.mxu0
    %225 = vmatprep.mubr.bf16.mxu0 0
    %226 = vmatmul.mubr.bf16.gmra.mxu0 %v108
    %v227 = vpop.f32.mrf.mxu0
    %v228 = vadd.f32 0.0, %v227
    %v229 = vpop.f32.mrf.mxu0
    %v230 = vpop.f32.mrf.mxu0
    %v231 = vadd.f32 0.0, %v230
    %v232 = vpop.f32.mrf.mxu0
    %233 = vmatprep.mubr.bf16.mxu0 0
    %234 = vmatmul.mubr.bf16.gmra.mxu0 %v109
    %v235 = vpop.f32.mrf.mxu0
    %v236 = vadd.f32 0.0, %v235
    %v237 = vpop.f32.mrf.mxu0
    %v238 = vpop.f32.mrf.mxu0
    %v239 = vadd.f32 0.0, %v238
    %v240 = vpop.f32.mrf.mxu0
    %241 = vmatprep.mubr.bf16.mxu0 0
    %242 = vmatmul.mubr.bf16.gmra.mxu0 %v110
    %v243 = vpop.f32.mrf.mxu0
    %v244 = vadd.f32 0.0, %v243
    %v245 = vpop.f32.mrf.mxu0
    %v246 = vpop.f32.mrf.mxu0
    %v247 = vadd.f32 0.0, %v246
    %v248 = vpop.f32.mrf.mxu0
    %249 = vmatprep.mubr.bf16.mxu0 0
    %250 = vmatmul.mubr.bf16.gmra.mxu0 %v111
    %v251 = vpop.f32.mrf.mxu0
    %v252 = vadd.f32 0.0, %v251
    %v253 = vpop.f32.mrf.mxu0
    %v254 = vpop.f32.mrf.mxu0
    %v255 = vadd.f32 0.0, %v254
    %v256 = vpop.f32.mrf.mxu0
    %257 = vmatprep.mubr.bf16.mxu0 0
    %258 = vmatmul.mubr.bf16.gmra.mxu0 %v112
    %v259 = vpop.f32.mrf.mxu0
    %v260 = vadd.f32 0.0, %v259
    %v261 = vpop.f32.mrf.mxu0
    %v262 = vpop.f32.mrf.mxu0
    %v263 = vadd.f32 0.0, %v262
    %v264 = vpop.f32.mrf.mxu0
    %265 = vdwg.mxu0
    %v266 = vpack.c.bf16 %v207, %v204
    %v267 = vpack.c.bf16 %v215, %v212
    %v268 = vpack.c.bf16 %v223, %v220
    %v269 = vpack.c.bf16 %v231, %v228
    %v270 = vpack.c.bf16 %v239, %v236
    %v271 = vpack.c.bf16 %v247, %v244
    %v272 = vpack.c.bf16 %v255, %v252
    %v273 = vpack.c.bf16 %v263, %v260
    %v282 = vunpack.c.l.b16 %v266
    %v283 = vunpack.c.h.b16 %v266
    %v284 = vunpack.c.l.b16 %v267
    %v285 = vunpack.c.h.b16 %v267
    %v286 = vunpack.c.l.b16 %v268
    %v287 = vunpack.c.h.b16 %v268
    %v288 = vunpack.c.l.b16 %v269
    %v289 = vunpack.c.h.b16 %v269
    %v290 = vunpack.c.l.b16 %v270
    %v291 = vunpack.c.h.b16 %v270
    %v292 = vunpack.c.l.b16 %v271
    %v293 = vunpack.c.h.b16 %v271
    %v294 = vunpack.c.l.b16 %v272
    %v295 = vunpack.c.h.b16 %v272
    %v296 = vunpack.c.l.b16 %v273
    %v297 = vunpack.c.h.b16 %v273
    %v298 = vpack.c.b16 %v282, %v282
    %v299 = vpack.c.b16 %v283, %v283
    %v300 = vpack.c.b16 %v284, %v284
    %v301 = vpack.c.b16 %v285, %v285
    %v302 = vpack.c.b16 %v286, %v286
    %v303 = vpack.c.b16 %v287, %v287
    %v304 = vpack.c.b16 %v288, %v288
    %v305 = vpack.c.b16 %v289, %v289
    %v306 = vpack.c.b16 %v290, %v290
    %v307 = vpack.c.b16 %v291, %v291
    %v308 = vpack.c.b16 %v292, %v292
    %v309 = vpack.c.b16 %v293, %v293
    %v310 = vpack.c.b16 %v294, %v294
    %v311 = vpack.c.b16 %v295, %v295
    %v312 = vpack.c.b16 %v296, %v296
    %v313 = vpack.c.b16 %v297, %v297
    %330 = vst [vmem:[#allocation7] sm:$0xf] %v298
    %331 = vst [vmem:[#allocation7 + $0x4] sm:$0xf] %v299
    %332 = vst [vmem:[#allocation7 + $0x8] sm:$0xf] %v300
    %333 = vst [vmem:[#allocation7 + $0xc] sm:$0xf] %v301
    %334 = vst [vmem:[#allocation7 + $0x10] sm:$0xf] %v302
    %335 = vst [vmem:[#allocation7 + $0x14] sm:$0xf] %v303
    %336 = vst [vmem:[#allocation7 + $0x18] sm:$0xf] %v304
    %337 = vst [vmem:[#allocation7 + $0x1c] sm:$0xf] %v305
    %338 = vst [vmem:[#allocation7 + $0x20] sm:$0xf] %v306
    %339 = vst [vmem:[#allocation7 + $0x24] sm:$0xf] %v307
    %340 = vst [vmem:[#allocation7 + $0x28] sm:$0xf] %v308
    %341 = vst [vmem:[#allocation7 + $0x2c] sm:$0xf] %v309
    %342 = vst [vmem:[#allocation7 + $0x30] sm:$0xf] %v310
    %343 = vst [vmem:[#allocation7 + $0x34] sm:$0xf] %v311
    %344 = vst [vmem:[#allocation7 + $0x38] sm:$0xf] %v312
    %345 = vst [vmem:[#allocation7 + $0x3c] sm:$0xf] %v313
    // Predicated region
    $region18: #{tpu_custom_call.1} parent=1 // pred_check
      _
    $region19: #{tpu_custom_call.1} parent=1 // pred_check_branch
      %347 = sbr.rel (0) target = $region21
    $region20: #{tpu_custom_call.1} parent=1 // pred_region
      %s349 = ssub.s32 1024, 1024
      %350 = vsyncadd [#allocation4], %s349
      %s351 = sshll.u32 [#allocation7], 4
      %s352 = int_to_ptr.vmem [resolvable:$true] %s351
      %357 = dma.vmem_to_hbm [thread:$0]  %s352, 1024, %s2, [#allocation4], 64, 64, 4
    $region21: #{tpu_custom_call.1} parent=1 // pred_fallthru
      _
    // Predicated region
    $region22: #{tpu_custom_call.1} parent=1 // pred_check
      _
    $region23: #{tpu_custom_call.1} parent=1 // pred_check_branch
      %359 = sbr.rel (0) target = $region25
    $region24: #{tpu_custom_call.1} parent=1 // pred_region
      %360 = dma.done [#allocation4], 1024
    $region25: #{tpu_custom_call.1} parent=1 // pred_fallthru
      _
    %361 = vsyncpa [#allocation3], 1
    %362 = vsyncpa [#allocation6], 1
    %363 = vsyncpa [#allocation4], 1

</llo_original>
